<compile_context>
chip_gen: v6e
topology: v6e:2x2x1
jax: 0.10.0
libtpu: 0.0.40
codegen_flags: <defaults>
</compile_context>

<pallas_src>
import functools

import jax
import jax.numpy as jnp
from jax.experimental import pallas as pl
from jax.experimental.pallas import tpu as pltpu


# ----------------------------------------------------------------------------
# Fused kernel: pool (avg+max) -> MLP -> sigmoid -> scale, one image per step.
#   x_ref : (1, C, HW)   activation, HW on the lane axis
#   w0_ref: (hidden, C)  == torch w_0.weight
#   w1_ref: (C, hidden)  == torch w_1.weight
# ----------------------------------------------------------------------------
def _block_channel_attention_kernel(x_ref, w0_ref, w1_ref, o_ref):
    x = x_ref[0].astype(jnp.float32)                       # (C, HW)

    # Global pooling over the spatial (lane) axis; keep results as 2-D columns.
    avg = jnp.mean(x, axis=-1, keepdims=True)               # (C, 1)
    mx = jnp.max(x, axis=-1, keepdims=True)                 # (C, 1)
    pooled = jnp.concatenate([avg, mx], axis=-1)             # (C, 2)  batched MLP input

    # Two-layer MLP (no bias), applied column-wise so weights stay in torch layout.
    h = jnp.dot(w0_ref[...].astype(jnp.float32), pooled,
                preferred_element_type=jnp.float32)          # (hidden, 2)
    h = jnp.maximum(h, 0.0)
    y = jnp.dot(w1_ref[...].astype(jnp.float32), h,
                preferred_element_type=jnp.float32)          # (C, 2)

    attn = jax.nn.sigmoid(y[:, 0:1] + y[:, 1:2])             # (C, 1)

    # Per-channel scaling; broadcast over the lane-dense spatial axis.
    o_ref[0] = (x * attn).astype(o_ref.dtype)


def block_channel_attention(x_nchw, w0, w1):
    """x_nchw: (N, C, H, W); w0: (hidden, C); w1: (C, hidden). Returns (N, C, H, W)."""
    N, C, H, W = x_nchw.shape
    hidden = w0.shape[0]
    HW = H * W
    x2 = x_nchw.reshape(N, C, HW)                            # free: contiguous view of NCHW

    out = pl.pallas_call(
        _block_channel_attention_kernel,
        out_shape=jax.ShapeDtypeStruct((N, C, HW), x_nchw.dtype),
        grid_spec=pltpu.PrefetchScalarGridSpec(
            num_scalar_prefetch=0,
            grid=(N,),
            in_specs=[
                pl.BlockSpec((1, C, HW), lambda n: (n, 0, 0)),
                pl.BlockSpec((hidden, C), lambda n: (0, 0)),
                pl.BlockSpec((C, hidden), lambda n: (0, 0)),
            ],
            out_specs=pl.BlockSpec((1, C, HW), lambda n: (n, 0, 0)),
        ),
        compiler_params=pltpu.CompilerParams(
            dimension_semantics=("parallel",)),
    )(x2, w0, w1)
    return out.reshape(N, C, H, W)


# ----------------------------------------------------------------------------
# Pure-JAX reference (mirrors the PyTorch forward) for a correctness check.
# ----------------------------------------------------------------------------
def ref_block_channel_attention(x_nchw, w0, w1):
    avg = jnp.mean(x_nchw, axis=(2, 3))                      # (N, C)
    mx = jnp.max(x_nchw, axis=(2, 3))                        # (N, C)

    def mlp(v):                                              # torch: w_1(relu(w_0(v)))
        return jnp.maximum(v @ w0.T, 0.0) @ w1.T

    attn = jax.nn.sigmoid(mlp(avg) + mlp(mx))                # (N, C)
    return x_nchw * attn[:, :, None, None]


if __name__ == "__main__":
    key = jax.random.PRNGKey(0)
    k_x, k_w0, k_w1 = jax.random.split(key, 3)

    N, C, H, W = 2, 64, 16, 16
    hidden = 32

    x = jax.random.normal(k_x, (N, C, H, W), jnp.float32)
    w0 = 0.2 * jax.random.normal(k_w0, (hidden, C), jnp.float32)   # torch w_0.weight
    w1 = 0.2 * jax.random.normal(k_w1, (C, hidden), jnp.float32)   # torch w_1.weight

    out = block_channel_attention(x, w0, w1)
    out = jax.block_until_ready(out)

    ref = jax.block_until_ready(ref_block_channel_attention(x, w0, w1))
    assert out.shape == (N, C, H, W)
    assert jnp.allclose(out, ref, atol=1e-4, rtol=1e-4), float(jnp.max(jnp.abs(out - ref)))

    print("KERNEL_OK")
</pallas_src>

<mosaic_0001>
module attributes {stable_mosaic.version = 11 : i64} {
  func.func @_block_channel_attention_kernel(%arg0: i32, %arg1: memref<1x64x256xf32, #tpu.memory_space<vmem>>, %arg2: memref<32x64xf32, #tpu.memory_space<vmem>>, %arg3: memref<64x32xf32, #tpu.memory_space<vmem>>, %arg4: memref<1x64x256xf32, #tpu.memory_space<vmem>>) attributes {dimension_semantics = [#tpu.dimension_semantics<parallel>], iteration_bounds = array<i64: 2>, scalar_prefetch = 0 : i64, scratch_operands = 0 : i64, tpu.core_type = #tpu.core_type<tc>, window_params = [{transform_indices = @transform_0, window_bounds = array<i64: 1, 64, 256>}, {pipeline_mode = #tpu.pipeline_mode<synchronous>, transform_indices = @transform_1, window_bounds = array<i64: 32, 64>}, {pipeline_mode = #tpu.pipeline_mode<synchronous>, transform_indices = @transform_2, window_bounds = array<i64: 64, 32>}, {transform_indices = @transform_3, window_bounds = array<i64: 1, 64, 256>}]} {
    %c0 = arith.constant 0 : index
    %c0_0 = arith.constant 0 : index
    %c0_1 = arith.constant 0 : index
    %0 = vector.load %arg1[%c0, %c0_0, %c0_1] : memref<1x64x256xf32, #tpu.memory_space<vmem>>, vector<1x64x256xf32>
    %1 = vector.shape_cast %0 : vector<1x64x256xf32> to vector<64x256xf32>
    %cst = arith.constant dense<0.000000e+00> : vector<64xf32>
    %2 = vector.multi_reduction <add>, %1, %cst [1] : vector<64x256xf32> to vector<64xf32>
    %3 = vector.shape_cast %2 : vector<64xf32> to vector<64x1xf32>
    %cst_2 = arith.constant 2.560000e+02 : f32
    %4 = vector.broadcast %cst_2 : f32 to vector<64x1xf32>
    %5 = arith.divf %3, %4 : vector<64x1xf32>
    %cst_3 = arith.constant dense<0xFF800000> : vector<64xf32>
    %6 = vector.multi_reduction <maximumf>, %1, %cst_3 [1] : vector<64x256xf32> to vector<64xf32>
    %7 = vector.shape_cast %6 : vector<64xf32> to vector<64x1xf32>
    %8 = tpu.concatenate %5, %7 in 1 : vector<64x1xf32>, vector<64x1xf32> -> vector<64x2xf32>
    %c0_4 = arith.constant 0 : index
    %c0_5 = arith.constant 0 : index
    %9 = vector.load %arg2[%c0_4, %c0_5] : memref<32x64xf32, #tpu.memory_space<vmem>>, vector<32x64xf32>
    %cst_6 = arith.constant dense<0.000000e+00> : vector<32x2xf32>
    %10 = tpu.matmul %9, %8, %cst_6 {dimension_numbers = #tpu.dot_dimension_numbers<[1], [0], [0], [1], [0, 0, 1, 1], [], []>} : vector<32x64xf32>, vector<64x2xf32>, vector<32x2xf32> -> vector<32x2xf32>
    %cst_7 = arith.constant 0.000000e+00 : f32
    %11 = vector.broadcast %cst_7 : f32 to vector<32x2xf32>
    %12 = arith.maximumf %10, %11 : vector<32x2xf32>
    %c0_8 = arith.constant 0 : index
    %c0_9 = arith.constant 0 : index
    %13 = vector.load %arg3[%c0_8, %c0_9] : memref<64x32xf32, #tpu.memory_space<vmem>>, vector<64x32xf32>
    %cst_10 = arith.constant dense<0.000000e+00> : vector<64x2xf32>
    %14 = tpu.matmul %13, %12, %cst_10 {dimension_numbers = #tpu.dot_dimension_numbers<[1], [0], [0], [1], [0, 0, 1, 1], [], []>} : vector<64x32xf32>, vector<32x2xf32>, vector<64x2xf32> -> vector<64x2xf32>
    %15 = vector.extract_strided_slice %14 {offsets = [0, 0], sizes = [64, 1], strides = [1, 1]} : vector<64x2xf32> to vector<64x1xf32>
    %16 = vector.extract_strided_slice %14 {offsets = [0, 1], sizes = [64, 1], strides = [1, 1]} : vector<64x2xf32> to vector<64x1xf32>
    %17 = arith.addf %15, %16 : vector<64x1xf32>
    %18 = arith.negf %17 : vector<64x1xf32>
    %19 = math.exp %18 : vector<64x1xf32>
    %cst_11 = arith.constant 1.000000e+00 : f32
    %20 = vector.broadcast %cst_11 : f32 to vector<64x1xf32>
    %21 = arith.addf %20, %19 : vector<64x1xf32>
    %22 = arith.divf %20, %21 : vector<64x1xf32>
    %23 = vector.broadcast %22 : vector<64x1xf32> to vector<64x256xf32>
    %24 = arith.mulf %1, %23 : vector<64x256xf32>
    %c0_12 = arith.constant 0 : index
    %c0_13 = arith.constant 0 : index
    %c0_14 = arith.constant 0 : index
    %25 = vector.load %arg4[%c0_12, %c0_13, %c0_14] : memref<1x64x256xf32, #tpu.memory_space<vmem>>, vector<1x64x256xf32>
    %26 = vector.shape_cast %25 : vector<1x64x256xf32> to vector<64x256xf32>
    %27 = vector.shape_cast %24 : vector<64x256xf32> to vector<1x64x256xf32>
    tpu.vector_store %arg4[%c0_12, %c0_13, %c0_14], %27 {strides = array<i32>} : memref<1x64x256xf32, #tpu.memory_space<vmem>>, vector<1x64x256xf32>,
    return
  }
  func.func @transform_0(%arg0: i32) -> (i32, i32, i32) {
    %c0_i32 = arith.constant 0 : i32
    %c0_i32_0 = arith.constant 0 : i32
    %c0_i32_1 = arith.constant 0 : i32
    return %arg0, %c0_i32, %c0_i32_0 : i32, i32, i32
  }
  func.func @transform_1(%arg0: i32) -> (i32, i32) {
    %c0_i32 = arith.constant 0 : i32
    %c0_i32_0 = arith.constant 0 : i32
    %c0_i32_1 = arith.constant 0 : i32
    return %c0_i32, %c0_i32_0 : i32, i32
  }
  func.func @transform_2(%arg0: i32) -> (i32, i32) {
    %c0_i32 = arith.constant 0 : i32
    %c0_i32_0 = arith.constant 0 : i32
    %c0_i32_1 = arith.constant 0 : i32
    return %c0_i32, %c0_i32_0 : i32, i32
  }
  func.func @transform_3(%arg0: i32) -> (i32, i32, i32) {
    %c0_i32 = arith.constant 0 : i32
    %c0_i32_0 = arith.constant 0 : i32
    %c0_i32_1 = arith.constant 0 : i32
    return %arg0, %c0_i32, %c0_i32_0 : i32, i32, i32
  }
}

</mosaic_0001>

<llo_original>
// kernel: tpu_custom_call.1
$region0: #{tpu_custom_call.1}
  #allocation0 [shape = 'u32[]', space=smem, size = 0x4, offset = 0x4, fixed_abs, tag = 'smem constant byte address 0x4 - core index']
  #allocation1 [shape = 'u32[144,128]{1,0:T(1,128)}', space=vmem, size = 0x12000, scoped, tag = 'internal scratch']
  %s0 = inlined_call_operand.hbm [shape: f32[2,64,256], index: 0, kind: input, shape index: {}]
  %s1 = inlined_call_operand.vmem [shape: f32[32,64], index: 1, kind: input, shape index: {}]
  %s2 = inlined_call_operand.vmem [shape: f32[64,32], index: 2, kind: input, shape index: {}]
  %s3 = inlined_call_operand.hbm [shape: f32[2,64,256], index: 3, kind: output, shape index: {}]
  %s4 = sld [smem:[#allocation0]]
  $region49: #{tpu_custom_call.1} parent=0
    _
  %s6 = ssub.s32 1, %s4
  %s7 = scalar_select 0, %s6, %s4
  $region1: #{tpu_custom_call.1} parent=0
    #allocation2 [shape = 'u8[131072]{0}', space=vmem, size = 0x20000, scoped, tag = 'input window, operand 0']
    #allocation3 [shape = 's32[2]{0}', space=sflag, size = 0x8, scoped, tag = 'scoped memory for tpu_custom_call.1']
    #allocation4 [shape = 's32[2]{0}', space=sflag, size = 0x8, scoped, tag = 'scoped memory for tpu_custom_call.1']
    #allocation5 [shape = 'u8[131072]{0}', space=vmem, size = 0x20000, scoped, tag = 'output window, operand 0']
    %8 = vsyncpa [#allocation3], 0
    %s9 = scalar_lea.sflag [#allocation3], 1
    %10 = vsyncpa %s9, 0
    %11 = vsyncpa [#allocation4], 0
    %s12 = scalar_lea.sflag [#allocation4], 1
    %13 = vsyncpa %s12, 0
    loop: start=0, step=1, limit=4
    $region2: #{tpu_custom_call.1} parent=1 // loop_pre_header
      _
    $region3: #{tpu_custom_call.1} parent=1 // loop_header
      %s15 = sphi 0, %s19
      %p16 = scmp.ge.s32.totalorder %s15, 4
      %s25 = sphi 0, %s27
      %s28 = sphi 0, %s25
      %s29 = sphi 0, %s28
      %s45 = sphi 0, %s29
      %s49 = sphi 0, %s49
      %s51 = sphi 0, %s49
      %s52 = sphi 0, %s51
      %s66 = sphi 0, %s52
      %s70 = sphi 0, %s70
      %s72 = sphi 0, %s70
      %s73 = sphi 0, %s72
      %s87 = sphi 0, %s73
      %s93 = sphi 0, %s95
      %s96 = sphi 0, %s93
      %s97 = sphi 0, %s96
      %s113 = sphi 0, %s97
    $region4: #{tpu_custom_call.1} parent=1 // loop_header_branch
      %18 = sbr.rel (%p16) target = $region8
    $region5: #{tpu_custom_call.1} parent=1 // loop_body
      %s20 = ssub.s32 %s15, 1
      %s21 = ssub.s32 %s15, 2
      %s22 = sadd.s32 %s15, 1
      %s23 = ssub.s32 %s15, %s22
      %p24 = scmp.eq.s32.totalorder %s23, 0
      %s26 = sadd.s32 %s25, 1
      %s27 = scalar_select %p24, %s25, %s26
      %p30 = pneg %p24
      %p31 = scmp.eq.s32.totalorder %s15, 1
      %p32 = por %p30, %p31
      %p33 = scmp.ne.s32.totalorder %s25, %s28
      %p34 = scmp.eq.s32.totalorder %s15, 0
      %p35 = por %p33, %p34
      %p36 = scmp.ne.s32.totalorder %s25, %s28
      %p37 = scmp.eq.s32.totalorder %s20, 1
      %p38 = por %p36, %p37
      %p39 = scmp.ne.s32.totalorder %s28, %s29
      %p40 = scmp.eq.s32.totalorder %s20, 0
      %p41 = por %p39, %p40
      %p42 = scmp.ne.s32.totalorder %s28, %s29
      %p43 = scmp.eq.s32.totalorder %s21, 1
      %p44 = por %p42, %p43
      %p46 = scmp.ne.s32.totalorder %s29, %s45
      %p47 = scmp.eq.s32.totalorder %s21, 0
      %p48 = por %p46, %p47
      %s50 = sadd.s32 %s49, 1
      %p53 = scmp.eq.s32.totalorder %s15, 1
      %p54 = scmp.ne.s32.totalorder %s49, %s51
      %p55 = scmp.eq.s32.totalorder %s15, 0
      %p56 = por %p54, %p55
      %p57 = scmp.ne.s32.totalorder %s49, %s51
      %p58 = scmp.eq.s32.totalorder %s20, 1
      %p59 = por %p57, %p58
      %p60 = scmp.ne.s32.totalorder %s51, %s52
      %p61 = scmp.eq.s32.totalorder %s20, 0
      %p62 = por %p60, %p61
      %p63 = scmp.ne.s32.totalorder %s51, %s52
      %p64 = scmp.eq.s32.totalorder %s21, 1
      %p65 = por %p63, %p64
      %p67 = scmp.ne.s32.totalorder %s52, %s66
      %p68 = scmp.eq.s32.totalorder %s21, 0
      %p69 = por %p67, %p68
      %s71 = sadd.s32 %s70, 1
      %p74 = scmp.eq.s32.totalorder %s15, 1
      %p75 = scmp.ne.s32.totalorder %s70, %s72
      %p76 = scmp.eq.s32.totalorder %s15, 0
      %p77 = por %p75, %p76
      %p78 = scmp.ne.s32.totalorder %s70, %s72
      %p79 = scmp.eq.s32.totalorder %s20, 1
      %p80 = por %p78, %p79
      %p81 = scmp.ne.s32.totalorder %s72, %s73
      %p82 = scmp.eq.s32.totalorder %s20, 0
      %p83 = por %p81, %p82
      %p84 = scmp.ne.s32.totalorder %s72, %s73
      %p85 = scmp.eq.s32.totalorder %s21, 1
      %p86 = por %p84, %p85
      %p88 = scmp.ne.s32.totalorder %s73, %s87
      %p89 = scmp.eq.s32.totalorder %s21, 0
      %p90 = por %p88, %p89
      %s91 = ssub.s32 %s15, %s22
      %p92 = scmp.eq.s32.totalorder %s91, 0
      %s94 = sadd.s32 %s93, 1
      %s95 = scalar_select %p92, %s93, %s94
      %p98 = pneg %p92
      %p99 = scmp.eq.s32.totalorder %s15, 1
      %p100 = por %p98, %p99
      %p101 = scmp.ne.s32.totalorder %s93, %s96
      %p102 = scmp.eq.s32.totalorder %s15, 0
      %p103 = por %p101, %p102
      %p104 = scmp.ne.s32.totalorder %s93, %s96
      %p105 = scmp.eq.s32.totalorder %s20, 1
      %p106 = por %p104, %p105
      %p107 = scmp.ne.s32.totalorder %s96, %s97
      %p108 = scmp.eq.s32.totalorder %s20, 0
      %p109 = por %p107, %p108
      %p110 = scmp.ne.s32.totalorder %s96, %s97
      %p111 = scmp.eq.s32.totalorder %s21, 1
      %p112 = por %p110, %p111
      %p114 = scmp.ne.s32.totalorder %s97, %s113
      %p115 = scmp.eq.s32.totalorder %s21, 0
      %p116 = por %p114, %p115
      %p117 = scmp.le.s32.totalorder 1, %s15
      %p118 = scmp.lt.s32.totalorder %s15, 3
      %p119 = pnand %p117, %p118
      %p120 = pneg %p119
      // Predicated region
      $region9: #{tpu_custom_call.1} parent=5 // pred_check
        _
      $region10: #{tpu_custom_call.1} parent=5 // pred_check_branch
        %122 = sbr.rel (%p119) target = $region12
      $region11: #{tpu_custom_call.1} parent=5 // pred_region
        %s123 = ssub.s32 %s15, 1
        // Predicated region
        $region13: #{tpu_custom_call.1} parent=11 // pred_check
          %p124 = pneg %p62
        $region14: #{tpu_custom_call.1} parent=11 // pred_check_branch
          %126 = sbr.rel (%p124) target = $region16
        $region15: #{tpu_custom_call.1} parent=11 // pred_region
          _
        $region16: #{tpu_custom_call.1} parent=11 // pred_fallthru
          _
        // Predicated region
        $region17: #{tpu_custom_call.1} parent=11 // pred_check
          %p127 = pneg %p83
        $region18: #{tpu_custom_call.1} parent=11 // pred_check_branch
          %129 = sbr.rel (%p127) target = $region20
        $region19: #{tpu_custom_call.1} parent=11 // pred_region
          _
        $region20: #{tpu_custom_call.1} parent=11 // pred_fallthru
          _
      $region12: #{tpu_custom_call.1} parent=5 // pred_fallthru
        _
      %p130 = scmp.lt.s32.totalorder %s15, 2
      // Predicated region
      $region21: #{tpu_custom_call.1} parent=5 // pred_check
        %p131 = pneg %p130
      $region22: #{tpu_custom_call.1} parent=5 // pred_check_branch
        %133 = sbr.rel (%p131) target = $region24
      $region23: #{tpu_custom_call.1} parent=5 // pred_region
        // Predicated region
        $region25: #{tpu_custom_call.1} parent=23 // pred_check
          %p134 = pneg %p35
        $region26: #{tpu_custom_call.1} parent=23 // pred_check_branch
          %136 = sbr.rel (%p134) target = $region28
        $region27: #{tpu_custom_call.1} parent=23 // pred_region
          %s137 = sand.u32 %s25, 1
          %s138 = scalar_lea.sflag [#allocation3], %s137
          %s139 = sand.u32 %s25, 1
          %s140 = smul.addr %s139, 128
          %s141 = scalar_lea.vmem [#allocation2], %s140
          %s143 = ssub.s32 2048, 2048
          %144 = vsyncadd %s138, %s143
          %s145 = smul.addr %s15, 16
          %s146 = smul.addr %s145, 128
          %s147 = scalar_lea.hbm %s0, %s146
          %s148 = sshll.u32 %s141, 4
          %s149 = int_to_ptr.vmem [resolvable:$true] %s148
          %154 = dma.hbm_to_vmem [thread:$0]  %s147, 2048, %s149, %s138, 256, 256, 16
        $region28: #{tpu_custom_call.1} parent=23 // pred_fallthru
          _
      $region24: #{tpu_custom_call.1} parent=5 // pred_fallthru
        _
      %p155 = scmp.le.s32.totalorder 1, %s15
      %p156 = scmp.lt.s32.totalorder %s15, 3
      %p157 = pnand %p155, %p156
      %p158 = pneg %p157
      // Predicated region
      $region29: #{tpu_custom_call.1} parent=5 // pred_check
        _
      $region30: #{tpu_custom_call.1} parent=5 // pred_check_branch
        %160 = sbr.rel (%p157) target = $region32
      $region31: #{tpu_custom_call.1} parent=5 // pred_region
        %s161 = ssub.s32 %s15, 1
        %s162 = sand.u32 %s28, 1
        %s163 = scalar_lea.sflag [#allocation3], %s162
        %s164 = sand.u32 %s28, 1
        %s165 = smul.addr %s164, 128
        %s166 = scalar_lea.vmem [#allocation2], %s165
        // Predicated region
        $region33: #{tpu_custom_call.1} parent=31 // pred_check
          %p167 = pneg %p41
        $region34: #{tpu_custom_call.1} parent=31 // pred_check_branch
          %169 = sbr.rel (%p167) target = $region36
        $region35: #{tpu_custom_call.1} parent=31 // pred_region
          %170 = dma.done %s163, 2048
        $region36: #{tpu_custom_call.1} parent=31 // pred_fallthru
          _
        %s171 = sand.u32 %s28, 1
        %s172 = scalar_lea.sflag [#allocation3], %s171
        %s173 = sand.u32 %s28, 1
        %s174 = smul.addr %s173, 128
        %s175 = scalar_lea.vmem [#allocation2], %s174
        %p176 = pneg %p41
        %p177 = pneg %p38
        %p178 = pneg %p62
        %p179 = pneg %p59
        %p180 = pneg %p83
        %p181 = pneg %p80
        %p182 = pneg %p109
        %p183 = pneg %p106
        %s184 = sand.u32 %s96, 1
        %s185 = scalar_lea.sflag [#allocation4], %s184
        %s186 = sand.u32 %s96, 1
        %s187 = smul.addr %s186, 128
        %s188 = scalar_lea.vmem [#allocation5], %s187
        %v189 = vld [vmem:[%s166] sm:$0xff]
        %v190 = vld [vmem:[%s166 + $0x8] sm:$0xff]
        %v191 = vld [vmem:[%s166 + $0x10] sm:$0xff]
        %v192 = vld [vmem:[%s166 + $0x18] sm:$0xff]
        %v193 = vld [vmem:[%s166 + $0x20] sm:$0xff]
        %v194 = vld [vmem:[%s166 + $0x28] sm:$0xff]
        %v195 = vld [vmem:[%s166 + $0x30] sm:$0xff]
        %v196 = vld [vmem:[%s166 + $0x38] sm:$0xff]
        %v197 = vld [vmem:[%s166 + $0x40] sm:$0xff]
        %v198 = vld [vmem:[%s166 + $0x48] sm:$0xff]
        %v199 = vld [vmem:[%s166 + $0x50] sm:$0xff]
        %v200 = vld [vmem:[%s166 + $0x58] sm:$0xff]
        %v201 = vld [vmem:[%s166 + $0x60] sm:$0xff]
        %v202 = vld [vmem:[%s166 + $0x68] sm:$0xff]
        %v203 = vld [vmem:[%s166 + $0x70] sm:$0xff]
        %v204 = vld [vmem:[%s166 + $0x78] sm:$0xff]
        %v205 = vadd.f32 %v189, %v190
        %206 = vadd.xlane.f32.xlu0 %v205
        %v207 = vpop.xlane.xlu0 %206
        %v208 = vadd.f32 %v191, %v192
        %209 = vadd.xlane.f32.xlu0 %v208
        %v210 = vpop.xlane.xlu0 %209
        %v211 = vadd.f32 %v193, %v194
        %212 = vadd.xlane.f32.xlu0 %v211
        %v213 = vpop.xlane.xlu0 %212
        %v214 = vadd.f32 %v195, %v196
        %215 = vadd.xlane.f32.xlu0 %v214
        %v216 = vpop.xlane.xlu0 %215
        %v217 = vadd.f32 %v197, %v198
        %218 = vadd.xlane.f32.xlu0 %v217
        %v219 = vpop.xlane.xlu0 %218
        %v220 = vadd.f32 %v199, %v200
        %221 = vadd.xlane.f32.xlu0 %v220
        %v222 = vpop.xlane.xlu0 %221
        %v223 = vadd.f32 %v201, %v202
        %224 = vadd.xlane.f32.xlu0 %v223
        %v225 = vpop.xlane.xlu0 %224
        %v226 = vadd.f32 %v203, %v204
        %227 = vadd.xlane.f32.xlu0 %v226
        %v228 = vpop.xlane.xlu0 %227
        %v229 = vrcp.pop 256.0
        %v230 = vmul.f32 %v207, %v229
        %v231 = vmul.f32 %v210, %v229
        %v232 = vmul.f32 %v213, %v229
        %v233 = vmul.f32 %v216, %v229
        %v234 = vmul.f32 %v219, %v229
        %v235 = vmul.f32 %v222, %v229
        %v236 = vmul.f32 %v225, %v229
        %v237 = vmul.f32 %v228, %v229
        %v238 = vmax.f32 %v189, %v190
        %239 = vmax.xlane.f32.xlu0 %v238
        %v240 = vpop.xlane.xlu0 %239
        %v241 = vmax.f32 %v191, %v192
        %242 = vmax.xlane.f32.xlu0 %v241
        %v243 = vpop.xlane.xlu0 %242
        %v244 = vmax.f32 %v193, %v194
        %245 = vmax.xlane.f32.xlu0 %v244
        %v246 = vpop.xlane.xlu0 %245
        %v247 = vmax.f32 %v195, %v196
        %248 = vmax.xlane.f32.xlu0 %v247
        %v249 = vpop.xlane.xlu0 %248
        %v250 = vmax.f32 %v197, %v198
        %251 = vmax.xlane.f32.xlu0 %v250
        %v252 = vpop.xlane.xlu0 %251
        %v253 = vmax.f32 %v199, %v200
        %254 = vmax.xlane.f32.xlu0 %v253
        %v255 = vpop.xlane.xlu0 %254
        %v256 = vmax.f32 %v201, %v202
        %257 = vmax.xlane.f32.xlu0 %v256
        %v258 = vpop.xlane.xlu0 %257
        %v259 = vmax.f32 %v203, %v204
        %260 = vmax.xlane.f32.xlu0 %v259
        %v261 = vpop.xlane.xlu0 %260
        %vm262 = vcmask 7168
        %v263 = vsel %vm262, %v230, %v240
        %v264 = vsel %vm262, %v231, %v243
        %v265 = vsel %vm262, %v232, %v246
        %v266 = vsel %vm262, %v233, %v249
        %v267 = vsel %vm262, %v234, %v252
        %v268 = vsel %vm262, %v235, %v255
        %v269 = vsel %vm262, %v236, %v258
        %v270 = vsel %vm262, %v237, %v261
        %v271 = vld [vmem:[%s1] sm:$0xff]
        %v272 = vld [vmem:[%s1 + $0x8] sm:$0xff]
        %v273 = vld [vmem:[%s1 + $0x10] sm:$0xff]
        %v274 = vld [vmem:[%s1 + $0x18] sm:$0xff]
        %vm275 = vcmask 523264
        %v277 = vsel %vm275, %v271, 0
        %v280 = vsel %vm275, %v272, 0
        %v283 = vsel %vm275, %v273, 0
        %v286 = vsel %vm275, %v274, 0
        %288 = vmatprep.subr.mxu0 0.0
        %289 = vmatpush1.msra.mxu0 0.0
        %290 = vmatprep.subr.mxu0 0.0
        %291 = vmatpush1.msra.mxu0 0.0
        %292 = vmatprep.subr.mxu0 0.0
        %293 = vmatpush1.msra.mxu0 0.0
        %294 = vmatprep.subr.mxu0 0.0
        %295 = vmatpush1.msra.mxu0 0.0
        %296 = vmatprep.subr.mxu0 0.0
        %297 = vmatpush1.msra.mxu0 0.0
        %298 = vmatprep.subr.mxu0 0.0
        %299 = vmatpush1.msra.mxu0 0.0
        %300 = vmatprep.subr.mxu0 0.0
        %301 = vmatpush1.msra.mxu0 0.0
        %302 = vmatprep.subr.mxu0 0.0
        %303 = vmatpush1.msra.mxu0 0.0
        %304 = vmatprep.subr.mxu0 0.0
        %305 = vmatpush1.msra.mxu0 %v270
        %306 = vmatprep.subr.mxu0 0.0
        %307 = vmatpush1.msra.mxu0 %v269
        %308 = vmatprep.subr.mxu0 0.0
        %309 = vmatpush1.msra.mxu0 %v268
        %310 = vmatprep.subr.mxu0 0.0
        %311 = vmatpush1.msra.mxu0 %v267
        %312 = vmatprep.subr.mxu0 0.0
        %313 = vmatpush1.msra.mxu0 %v266
        %314 = vmatprep.subr.mxu0 0.0
        %315 = vmatpush1.msra.mxu0 %v265
        %316 = vmatprep.subr.mxu0 0.0
        %317 = vmatpush1.msra.mxu0 %v264
        %318 = vmatprep.subr.mxu0 0.0
        %319 = vmatpush1.msra.mxu0 %v263
        %320 = vmatprep.subr.mxu0 0.0
        %321 = vmatpush2.msra.mxu0 0.0
        %322 = vmatprep.subr.mxu0 0.0
        %323 = vmatpush2.msra.mxu0 0.0
        %324 = vmatprep.subr.mxu0 0.0
        %325 = vmatpush2.msra.mxu0 0.0
        %326 = vmatprep.subr.mxu0 0.0
        %327 = vmatpush2.msra.mxu0 0.0
        %328 = vmatprep.subr.mxu0 0.0
        %329 = vmatpush2.msra.mxu0 0.0
        %330 = vmatprep.subr.mxu0 0.0
        %331 = vmatpush2.msra.mxu0 0.0
        %332 = vmatprep.subr.mxu0 0.0
        %333 = vmatpush2.msra.mxu0 0.0
        %334 = vmatprep.subr.mxu0 0.0
        %335 = vmatpush2.msra.mxu0 0.0
        %336 = vmatprep.subr.mxu0 0.0
        %337 = vmatpush2.msra.mxu0 0.0
        %338 = vmatprep.subr.mxu0 0.0
        %339 = vmatpush2.msra.mxu0 0.0
        %340 = vmatprep.subr.mxu0 0.0
        %341 = vmatpush2.msra.mxu0 0.0
        %342 = vmatprep.subr.mxu0 0.0
        %343 = vmatpush2.msra.mxu0 0.0
        %344 = vmatprep.subr.mxu0 0.0
        %345 = vmatpush2.msra.mxu0 0.0
        %346 = vmatprep.subr.mxu0 0.0
        %347 = vmatpush2.msra.mxu0 0.0
        %348 = vmatprep.subr.mxu0 0.0
        %349 = vmatpush2.msra.mxu0 0.0
        %350 = vmatprep.subr.mxu0 0.0
        %351 = vmatpush2.msra.mxu0 0.0
        %352 = vmatprep.mubr.f32.mxu0 0.0
        %353 = vmatmul.mubr.f32.gmra.mxu0 %v277
        %v354 = vpop.f32.mrf.mxu0
        %v355 = vadd.f32 0.0, %v354
        %v356 = vpop.f32.mrf.mxu0
        %357 = vmatprep.mubr.f32.mxu0 0.0
        %358 = vmatmul.mubr.f32.gmra.mxu0 %v280
        %v359 = vpop.f32.mrf.mxu0
        %v360 = vadd.f32 0.0, %v359
        %v361 = vpop.f32.mrf.mxu0
        %362 = vmatprep.mubr.f32.mxu0 0.0
        %363 = vmatmul.mubr.f32.gmra.mxu0 %v283
        %v364 = vpop.f32.mrf.mxu0
        %v365 = vadd.f32 0.0, %v364
        %v366 = vpop.f32.mrf.mxu0
        %367 = vmatprep.mubr.f32.mxu0 0.0
        %368 = vmatmul.mubr.f32.gmra.mxu0 %v286
        %v369 = vpop.f32.mrf.mxu0
        %v370 = vadd.f32 0.0, %v369
        %v371 = vpop.f32.mrf.mxu0
        %372 = vdwg.mxu0
        %v373 = vmax.f32 %v355, 0.0
        %v374 = vmax.f32 %v360, 0.0
        %v375 = vmax.f32 %v365, 0.0
        %v376 = vmax.f32 %v370, 0.0
        %v377 = vld [vmem:[%s2] sm:$0xff]
        %v378 = vld [vmem:[%s2 + $0x8] sm:$0xff]
        %v379 = vld [vmem:[%s2 + $0x10] sm:$0xff]
        %v380 = vld [vmem:[%s2 + $0x18] sm:$0xff]
        %v381 = vld [vmem:[%s2 + $0x20] sm:$0xff]
        %v382 = vld [vmem:[%s2 + $0x28] sm:$0xff]
        %v383 = vld [vmem:[%s2 + $0x30] sm:$0xff]
        %v384 = vld [vmem:[%s2 + $0x38] sm:$0xff]
        %vm385 = vcmask 261120
        %v387 = vsel %vm385, %v377, 0
        %v390 = vsel %vm385, %v378, 0
        %v393 = vsel %vm385, %v379, 0
        %v396 = vsel %vm385, %v380, 0
        %v399 = vsel %vm385, %v381, 0
        %v402 = vsel %vm385, %v382, 0
        %v405 = vsel %vm385, %v383, 0
        %v408 = vsel %vm385, %v384, 0
        %410 = vmatprep.subr.mxu0 0.0
        %411 = vmatpush1.msra.mxu0 0.0
        %412 = vmatprep.subr.mxu0 0.0
        %413 = vmatpush1.msra.mxu0 0.0
        %414 = vmatprep.subr.mxu0 0.0
        %415 = vmatpush1.msra.mxu0 0.0
        %416 = vmatprep.subr.mxu0 0.0
        %417 = vmatpush1.msra.mxu0 0.0
        %418 = vmatprep.subr.mxu0 0.0
        %419 = vmatpush1.msra.mxu0 0.0
        %420 = vmatprep.subr.mxu0 0.0
        %421 = vmatpush1.msra.mxu0 0.0
        %422 = vmatprep.subr.mxu0 0.0
        %423 = vmatpush1.msra.mxu0 0.0
        %424 = vmatprep.subr.mxu0 0.0
        %425 = vmatpush1.msra.mxu0 0.0
        %426 = vmatprep.subr.mxu0 0.0
        %427 = vmatpush1.msra.mxu0 0.0
        %428 = vmatprep.subr.mxu0 0.0
        %429 = vmatpush1.msra.mxu0 0.0
        %430 = vmatprep.subr.mxu0 0.0
        %431 = vmatpush1.msra.mxu0 0.0
        %432 = vmatprep.subr.mxu0 0.0
        %433 = vmatpush1.msra.mxu0 0.0
        %434 = vmatprep.subr.mxu0 0.0
        %435 = vmatpush1.msra.mxu0 %v376
        %436 = vmatprep.subr.mxu0 0.0
        %437 = vmatpush1.msra.mxu0 %v375
        %438 = vmatprep.subr.mxu0 0.0
        %439 = vmatpush1.msra.mxu0 %v374
        %440 = vmatprep.subr.mxu0 0.0
        %441 = vmatpush1.msra.mxu0 %v373
        %442 = vmatprep.subr.mxu0 0.0
        %443 = vmatpush2.msra.mxu0 0.0
        %444 = vmatprep.subr.mxu0 0.0
        %445 = vmatpush2.msra.mxu0 0.0
        %446 = vmatprep.subr.mxu0 0.0
        %447 = vmatpush2.msra.mxu0 0.0
        %448 = vmatprep.subr.mxu0 0.0
        %449 = vmatpush2.msra.mxu0 0.0
        %450 = vmatprep.subr.mxu0 0.0
        %451 = vmatpush2.msra.mxu0 0.0
        %452 = vmatprep.subr.mxu0 0.0
        %453 = vmatpush2.msra.mxu0 0.0
        %454 = vmatprep.subr.mxu0 0.0
        %455 = vmatpush2.msra.mxu0 0.0
        %456 = vmatprep.subr.mxu0 0.0
        %457 = vmatpush2.msra.mxu0 0.0
        %458 = vmatprep.subr.mxu0 0.0
        %459 = vmatpush2.msra.mxu0 0.0
        %460 = vmatprep.subr.mxu0 0.0
        %461 = vmatpush2.msra.mxu0 0.0
        %462 = vmatprep.subr.mxu0 0.0
        %463 = vmatpush2.msra.mxu0 0.0
        %464 = vmatprep.subr.mxu0 0.0
        %465 = vmatpush2.msra.mxu0 0.0
        %466 = vmatprep.subr.mxu0 0.0
        %467 = vmatpush2.msra.mxu0 0.0
        %468 = vmatprep.subr.mxu0 0.0
        %469 = vmatpush2.msra.mxu0 0.0
        %470 = vmatprep.subr.mxu0 0.0
        %471 = vmatpush2.msra.mxu0 0.0
        %472 = vmatprep.subr.mxu0 0.0
        %473 = vmatpush2.msra.mxu0 0.0
        %474 = vmatprep.mubr.f32.mxu0 0.0
        %475 = vmatmul.mubr.f32.gmra.mxu0 %v387
        %v476 = vpop.f32.mrf.mxu0
        %v477 = vadd.f32 0.0, %v476
        %v478 = vpop.f32.mrf.mxu0
        %479 = vmatprep.mubr.f32.mxu0 0.0
        %480 = vmatmul.mubr.f32.gmra.mxu0 %v390
        %v481 = vpop.f32.mrf.mxu0
        %v482 = vadd.f32 0.0, %v481
        %v483 = vpop.f32.mrf.mxu0
        %484 = vmatprep.mubr.f32.mxu0 0.0
        %485 = vmatmul.mubr.f32.gmra.mxu0 %v393
        %v486 = vpop.f32.mrf.mxu0
        %v487 = vadd.f32 0.0, %v486
        %v488 = vpop.f32.mrf.mxu0
        %489 = vmatprep.mubr.f32.mxu0 0.0
        %490 = vmatmul.mubr.f32.gmra.mxu0 %v396
        %v491 = vpop.f32.mrf.mxu0
        %v492 = vadd.f32 0.0, %v491
        %v493 = vpop.f32.mrf.mxu0
        %494 = vmatprep.mubr.f32.mxu0 0.0
        %495 = vmatmul.mubr.f32.gmra.mxu0 %v399
        %v496 = vpop.f32.mrf.mxu0
        %v497 = vadd.f32 0.0, %v496
        %v498 = vpop.f32.mrf.mxu0
        %499 = vmatprep.mubr.f32.mxu0 0.0
        %500 = vmatmul.mubr.f32.gmra.mxu0 %v402
        %v501 = vpop.f32.mrf.mxu0
        %v502 = vadd.f32 0.0, %v501
        %v503 = vpop.f32.mrf.mxu0
        %504 = vmatprep.mubr.f32.mxu0 0.0
        %505 = vmatmul.mubr.f32.gmra.mxu0 %v405
        %v506 = vpop.f32.mrf.mxu0
        %v507 = vadd.f32 0.0, %v506
        %v508 = vpop.f32.mrf.mxu0
        %509 = vmatprep.mubr.f32.mxu0 0.0
        %510 = vmatmul.mubr.f32.gmra.mxu0 %v408
        %v511 = vpop.f32.mrf.mxu0
        %v512 = vadd.f32 0.0, %v511
        %v513 = vpop.f32.mrf.mxu0
        %514 = vdwg.mxu0
        %523 = vrot.lane.b32.xlu0 %v477, 127
        %v524 = vpop.permute.xlu0 %523
        %525 = vrot.lane.b32.xlu0 %v482, 127
        %v526 = vpop.permute.xlu0 %525
        %527 = vrot.lane.b32.xlu0 %v487, 127
        %v528 = vpop.permute.xlu0 %527
        %529 = vrot.lane.b32.xlu0 %v492, 127
        %v530 = vpop.permute.xlu0 %529
        %531 = vrot.lane.b32.xlu0 %v497, 127
        %v532 = vpop.permute.xlu0 %531
        %533 = vrot.lane.b32.xlu0 %v502, 127
        %v534 = vpop.permute.xlu0 %533
        %535 = vrot.lane.b32.xlu0 %v507, 127
        %v536 = vpop.permute.xlu0 %535
        %537 = vrot.lane.b32.xlu0 %v512, 127
        %v538 = vpop.permute.xlu0 %537
        %v547 = vadd.f32 %v477, %v524
        %v548 = vadd.f32 %v482, %v526
        %v549 = vadd.f32 %v487, %v528
        %v550 = vadd.f32 %v492, %v530
        %v551 = vadd.f32 %v497, %v532
        %v552 = vadd.f32 %v502, %v534
        %v553 = vadd.f32 %v507, %v536
        %v554 = vadd.f32 %v512, %v538
        %v555 = vxor.u32 %v547, 2147483648
        %v556 = vxor.u32 %v548, 2147483648
        %v557 = vxor.u32 %v549, 2147483648
        %v558 = vxor.u32 %v550, 2147483648
        %v559 = vxor.u32 %v551, 2147483648
        %v560 = vxor.u32 %v552, 2147483648
        %v561 = vxor.u32 %v553, 2147483648
        %v562 = vxor.u32 %v554, 2147483648
        %v563 = vmul.f32 %v555, 1.442695
        %v564 = vpow.pop %v563
        %v565 = vmul.f32 %v556, 1.442695
        %v566 = vpow.pop %v565
        %v567 = vmul.f32 %v557, 1.442695
        %v568 = vpow.pop %v567
        %v569 = vmul.f32 %v558, 1.442695
        %v570 = vpow.pop %v569
        %v571 = vmul.f32 %v559, 1.442695
        %v572 = vpow.pop %v571
        %v573 = vmul.f32 %v560, 1.442695
        %v574 = vpow.pop %v573
        %v575 = vmul.f32 %v561, 1.442695
        %v576 = vpow.pop %v575
        %v577 = vmul.f32 %v562, 1.442695
        %v578 = vpow.pop %v577
        %v579 = vadd.f32 %v564, 1.0
        %v580 = vadd.f32 %v566, 1.0
        %v581 = vadd.f32 %v568, 1.0
        %v582 = vadd.f32 %v570, 1.0
        %v583 = vadd.f32 %v572, 1.0
        %v584 = vadd.f32 %v574, 1.0
        %v585 = vadd.f32 %v576, 1.0
        %v586 = vadd.f32 %v578, 1.0
        %v587 = vrcp.pop %v579
        %v588 = vmul.f32 1.0, %v587
        %v589 = vrcp.pop %v580
        %v590 = vmul.f32 1.0, %v589
        %v591 = vrcp.pop %v581
        %v592 = vmul.f32 1.0, %v591
        %v593 = vrcp.pop %v582
        %v594 = vmul.f32 1.0, %v593
        %v595 = vrcp.pop %v583
        %v596 = vmul.f32 1.0, %v595
        %v597 = vrcp.pop %v584
        %v598 = vmul.f32 1.0, %v597
        %v599 = vrcp.pop %v585
        %v600 = vmul.f32 1.0, %v599
        %v601 = vrcp.pop %v586
        %v602 = vmul.f32 1.0, %v601
        %604 = vset.pattern.permute.xlu0 0
        %605 = vperm.xlu0 %604, %v588
        %v606 = vpop.permute.xlu0 %605
        %609 = vset.pattern.permute.xlu0 0
        %610 = vperm.xlu0 %609, %v590
        %v611 = vpop.permute.xlu0 %610
        %614 = vset.pattern.permute.xlu0 0
        %615 = vperm.xlu0 %614, %v592
        %v616 = vpop.permute.xlu0 %615
        %619 = vset.pattern.permute.xlu0 0
        %620 = vperm.xlu0 %619, %v594
        %v621 = vpop.permute.xlu0 %620
        %624 = vset.pattern.permute.xlu0 0
        %625 = vperm.xlu0 %624, %v596
        %v626 = vpop.permute.xlu0 %625
        %629 = vset.pattern.permute.xlu0 0
        %630 = vperm.xlu0 %629, %v598
        %v631 = vpop.permute.xlu0 %630
        %634 = vset.pattern.permute.xlu0 0
        %635 = vperm.xlu0 %634, %v600
        %v636 = vpop.permute.xlu0 %635
        %639 = vset.pattern.permute.xlu0 0
        %640 = vperm.xlu0 %639, %v602
        %v641 = vpop.permute.xlu0 %640
        %v643 = vmul.f32 %v189, %v606
        %v644 = vmul.f32 %v190, %v606
        %v645 = vmul.f32 %v191, %v611
        %v646 = vmul.f32 %v192, %v611
        %v647 = vmul.f32 %v193, %v616
        %v648 = vmul.f32 %v194, %v616
        %v649 = vmul.f32 %v195, %v621
        %v650 = vmul.f32 %v196, %v621
        %v651 = vmul.f32 %v197, %v626
        %v652 = vmul.f32 %v198, %v626
        %v653 = vmul.f32 %v199, %v631
        %v654 = vmul.f32 %v200, %v631
        %v655 = vmul.f32 %v201, %v636
        %v656 = vmul.f32 %v202, %v636
        %v657 = vmul.f32 %v203, %v641
        %v658 = vmul.f32 %v204, %v641
        %659 = vst [vmem:[%s188] sm:$0xff] %v643
        %660 = vst [vmem:[%s188 + $0x8] sm:$0xff] %v644
        %661 = vst [vmem:[%s188 + $0x10] sm:$0xff] %v645
        %662 = vst [vmem:[%s188 + $0x18] sm:$0xff] %v646
        %663 = vst [vmem:[%s188 + $0x20] sm:$0xff] %v647
        %664 = vst [vmem:[%s188 + $0x28] sm:$0xff] %v648
        %665 = vst [vmem:[%s188 + $0x30] sm:$0xff] %v649
        %666 = vst [vmem:[%s188 + $0x38] sm:$0xff] %v650
        %667 = vst [vmem:[%s188 + $0x40] sm:$0xff] %v651
        %668 = vst [vmem:[%s188 + $0x48] sm:$0xff] %v652
        %669 = vst [vmem:[%s188 + $0x50] sm:$0xff] %v653
        %670 = vst [vmem:[%s188 + $0x58] sm:$0xff] %v654
        %671 = vst [vmem:[%s188 + $0x60] sm:$0xff] %v655
        %672 = vst [vmem:[%s188 + $0x68] sm:$0xff] %v656
        %673 = vst [vmem:[%s188 + $0x70] sm:$0xff] %v657
        %674 = vst [vmem:[%s188 + $0x78] sm:$0xff] %v658
        %s675 = sand.u32 %s96, 1
        %s676 = scalar_lea.sflag [#allocation4], %s675
        %s677 = sand.u32 %s96, 1
        %s678 = smul.addr %s677, 128
        %s679 = scalar_lea.vmem [#allocation5], %s678
        // Predicated region
        $region37: #{tpu_custom_call.1} parent=31 // pred_check
          %p680 = pneg %p106
        $region38: #{tpu_custom_call.1} parent=31 // pred_check_branch
          %682 = sbr.rel (%p680) target = $region40
        $region39: #{tpu_custom_call.1} parent=31 // pred_region
          %s684 = ssub.s32 2048, 2048
          %685 = vsyncadd %s676, %s684
          %s686 = smul.addr %s20, 16
          %s687 = smul.addr %s686, 128
          %s688 = scalar_lea.hbm %s3, %s687
          %s689 = sshll.u32 %s679, 4
          %s690 = int_to_ptr.vmem [resolvable:$true] %s689
          %695 = dma.vmem_to_hbm [thread:$0]  %s690, 2048, %s688, %s676, 256, 256, 16
        $region40: #{tpu_custom_call.1} parent=31 // pred_fallthru
          _
      $region32: #{tpu_custom_call.1} parent=5 // pred_fallthru
        _
      %p696 = scmp.le.s32.totalorder 2, %s15
      // Predicated region
      $region41: #{tpu_custom_call.1} parent=5 // pred_check
        %p697 = pneg %p696
      $region42: #{tpu_custom_call.1} parent=5 // pred_check_branch
        %699 = sbr.rel (%p697) target = $region44
      $region43: #{tpu_custom_call.1} parent=5 // pred_region
        %s700 = ssub.s32 %s15, 2
        // Predicated region
        $region45: #{tpu_custom_call.1} parent=43 // pred_check
          %p701 = pneg %p112
        $region46: #{tpu_custom_call.1} parent=43 // pred_check_branch
          %703 = sbr.rel (%p701) target = $region48
        $region47: #{tpu_custom_call.1} parent=43 // pred_region
          %s704 = sand.u32 %s97, 1
          %s705 = scalar_lea.sflag [#allocation4], %s704
          %s706 = sand.u32 %s97, 1
          %s707 = smul.addr %s706, 128
          %s708 = scalar_lea.vmem [#allocation5], %s707
          %709 = dma.done %s705, 2048
        $region48: #{tpu_custom_call.1} parent=43 // pred_fallthru
          _
      $region44: #{tpu_custom_call.1} parent=5 // pred_fallthru
        _
    $region6: #{tpu_custom_call.1} parent=1 // loop_footer
      %s19 = sadd.s32 1, %s15
    $region7: #{tpu_custom_call.1} parent=1 // loop_footer_branch
      %14 = sbr.rel target = $region3
    $region8: #{tpu_custom_call.1} parent=1 // loop_exit
      _
    %710 = vsyncpa [#allocation3], 1
    %s711 = scalar_lea.sflag [#allocation3], 1
    %712 = vsyncpa %s711, 1
    %713 = vsyncpa [#allocation4], 1
    %s714 = scalar_lea.sflag [#allocation4], 1
    %715 = vsyncpa %s714, 1

</llo_original>
